<compile_context>
chip_gen: v7x
topology: tpu7x:2x2x1
jax: 0.10.0
libtpu: 0.0.40
codegen_flags: <defaults>
</compile_context>

<pallas_src>
import functools

import jax
import jax.numpy as jnp
from jax.experimental import pallas as pl
from jax.experimental.pallas import tpu as pltpu


INPUT_CHANNEL = 4
INPUT_SEQ_LEN = 50
INPUT_SIZE = INPUT_CHANNEL * INPUT_SEQ_LEN   # 200
HIDDEN_1 = 256
HIDDEN_2 = 256
OUTPUT_SIZE = 2

DEFAULT_BLOCK_BATCH = 2048              # rows per grid step; sweep {2048, 4096}
VMEM_LIMIT_BYTES = 32 * 1024 * 1024     # explicit; ~10 MiB actually used at tb=2048


def _round_up(n: int, m: int) -> int:
    return ((n + m - 1) // m) * m


def _choose_tile(batch: int, block_batch: int):
    """Pick (tile_rows, num_tiles).

    - Respect block_batch (VMEM budget).
    - For B >= 1024 force >= 2 tiles so ("parallel",) can use both v7x
      TensorCores; tb stays >= 512 so the MXU remains full on v5e/v6e.
    - Size tiles so the last tile is nearly full (no wasted padded tile).
    """
    min_tiles = 2 if batch >= 1024 else 1
    n_tiles = max(pl.cdiv(batch, block_batch), min_tiles)
    tb = pl.cdiv(batch, n_tiles)
    if tb >= 8:
        tb = _round_up(tb, 8)     # f32 sublane alignment for the batch dim
    else:
        tb = batch                # tiny batch: single full-array tile
    return tb, pl.cdiv(batch, tb)


def _mlp_kernel(x_ref,
                w1_ref, b1_ref,
                w2_ref, b2_ref,
                w3_ref, b3_ref,
                w4_ref, b4_ref,
                o_ref):
    """One batch tile: 4 fused matmuls (+bias, ReLU). bf16 MXU inputs, f32 accum."""
    # Layer 1: Linear(200 -> 256) + ReLU. K=200 contraction; Mosaic masks the
    # unaligned contraction padding, so no feature pre-padding is needed.
    x = x_ref[...].astype(jnp.bfloat16)                       # (tb, 200)
    h = jnp.dot(x, w1_ref[...],
                preferred_element_type=jnp.float32) + b1_ref[...]
    h = jnp.maximum(h, 0.0).astype(jnp.bfloat16)

    # Layer 2: Linear(256 -> 256) + ReLU
    h = jnp.dot(h, w2_ref[...],
                preferred_element_type=jnp.float32) + b2_ref[...]
    h = jnp.maximum(h, 0.0).astype(jnp.bfloat16)

    # Layer 3: Linear(256 -> 256) + ReLU
    h = jnp.dot(h, w3_ref[...],
                preferred_element_type=jnp.float32) + b3_ref[...]
    h = jnp.maximum(h, 0.0).astype(jnp.bfloat16)

    # Layer 4: Linear(256 -> 2), no activation.  Narrow (tb, 2) result is
    # stored directly; writeback is 8 B/row.
    out = jnp.dot(h, w4_ref[...],
                  preferred_element_type=jnp.float32) + b4_ref[...]
    o_ref[...] = out.astype(o_ref.dtype)


@functools.partial(jax.jit, static_argnames=("block_batch",))
def eyetracknet_mlp_forward(x, params, *, block_batch=DEFAULT_BLOCK_BATCH):
    """x: (B, 200) float32.  params: bf16-weight dict from prepare_params."""
    B = x.shape[0]
    assert x.shape[1] == INPUT_SIZE, x.shape

    tb, num_tiles = _choose_tile(B, block_batch)

    resident = lambda shape: pl.BlockSpec(shape, lambda i: (0, 0))

    out = pl.pallas_call(
        _mlp_kernel,
        out_shape=jax.ShapeDtypeStruct((B, OUTPUT_SIZE), jnp.float32),
        grid=(num_tiles,),
        in_specs=[
            pl.BlockSpec((tb, INPUT_SIZE), lambda i: (i, 0)),   # x (pipelined)
            resident((INPUT_SIZE, HIDDEN_1)),                   # w1 (200, 256)
            resident((1, HIDDEN_1)),                            # b1
            resident((HIDDEN_1, HIDDEN_1)),                     # w2
            resident((1, HIDDEN_1)),                            # b2
            resident((HIDDEN_1, HIDDEN_2)),                     # w3
            resident((1, HIDDEN_2)),                            # b3
            resident((HIDDEN_2, OUTPUT_SIZE)),                  # w4 (256, 2)
            resident((1, OUTPUT_SIZE)),                         # b4
        ],
        out_specs=pl.BlockSpec((tb, OUTPUT_SIZE), lambda i: (i, 0)),
        compiler_params=pltpu.CompilerParams(
            dimension_semantics=("parallel",),
            vmem_limit_bytes=VMEM_LIMIT_BYTES,
        ),
    )(x, params["w1"], params["b1"], params["w2"], params["b2"],
      params["w3"], params["b3"], params["w4"], params["b4"])

    return out


def init_params(key):
    """PyTorch nn.Linear default init: U(-k, k), k = 1/sqrt(fan_in). f32, logical shapes."""
    def linear_params(key, fan_in, fan_out):
        kw, kb = jax.random.split(key)
        bound = 1.0 / jnp.sqrt(fan_in)
        # Stored as (in, out) so the kernel computes x @ W (== torch's x @ W^T).
        w = jax.random.uniform(kw, (fan_in, fan_out), jnp.float32, -bound, bound)
        b = jax.random.uniform(kb, (1, fan_out), jnp.float32, -bound, bound)
        return w, b

    k1, k2, k3, k4 = jax.random.split(key, 4)
    w1, b1 = linear_params(k1, INPUT_SIZE, HIDDEN_1)
    w2, b2 = linear_params(k2, HIDDEN_1, HIDDEN_1)
    w3, b3 = linear_params(k3, HIDDEN_1, HIDDEN_2)
    w4, b4 = linear_params(k4, HIDDEN_2, OUTPUT_SIZE)
    return {"w1": w1, "b1": b1, "w2": w2, "b2": b2,
            "w3": w3, "b3": b3, "w4": w4, "b4": b4}


def prepare_params(raw):
    """Cast weights to bf16 for the MXU; biases stay f32. No padding needed."""
    return {
        "w1": raw["w1"].astype(jnp.bfloat16), "b1": raw["b1"].astype(jnp.float32),
        "w2": raw["w2"].astype(jnp.bfloat16), "b2": raw["b2"].astype(jnp.float32),
        "w3": raw["w3"].astype(jnp.bfloat16), "b3": raw["b3"].astype(jnp.float32),
        "w4": raw["w4"].astype(jnp.bfloat16), "b4": raw["b4"].astype(jnp.float32),
    }


def _reference_forward_f32(x, raw):
    """Exact f32 reference of the PyTorch module."""
    h = jnp.maximum(x @ raw["w1"] + raw["b1"], 0.0)
    h = jnp.maximum(h @ raw["w2"] + raw["b2"], 0.0)
    h = jnp.maximum(h @ raw["w3"] + raw["b3"], 0.0)
    return h @ raw["w4"] + raw["b4"]


def _reference_forward_bf16(x, prepped):
    """Plain-JAX reference with the same bf16-weight / f32-accumulation recipe."""
    h = jnp.dot(x.astype(jnp.bfloat16), prepped["w1"],
                preferred_element_type=jnp.float32) + prepped["b1"]
    h = jnp.maximum(h, 0.0)
    h = jnp.dot(h.astype(jnp.bfloat16), prepped["w2"],
                preferred_element_type=jnp.float32) + prepped["b2"]
    h = jnp.maximum(h, 0.0)
    h = jnp.dot(h.astype(jnp.bfloat16), prepped["w3"],
                preferred_element_type=jnp.float32) + prepped["b3"]
    h = jnp.maximum(h, 0.0)
    return jnp.dot(h.astype(jnp.bfloat16), prepped["w4"],
                   preferred_element_type=jnp.float32) + prepped["b4"]


if __name__ == "__main__":
    key = jax.random.PRNGKey(0)
    k_params, k_x = jax.random.split(key)

    raw_params = init_params(k_params)
    params = prepare_params(raw_params)

    batch = 8
    x = jax.random.normal(k_x, (batch, INPUT_SIZE), jnp.float32)

    out = jax.block_until_ready(eyetracknet_mlp_forward(x, params))
    assert out.shape == (batch, OUTPUT_SIZE), out.shape

    # Kernel math vs. identical-precision JAX reference (tight).
    ref_bf16 = _reference_forward_bf16(x, params)
    assert jnp.allclose(out, ref_bf16, atol=2e-3, rtol=2e-3), "mismatch vs bf16 reference"

    # Parity with the original f32 PyTorch module (bf16-appropriate tolerance).
    ref_f32 = _reference_forward_f32(x, raw_params)
    assert jnp.allclose(out, ref_f32, atol=5e-2, rtol=5e-2), "mismatch vs f32 reference"

    print("KERNEL_OK")
</pallas_src>

<mosaic_0001>
module attributes {stable_mosaic.version = 11 : i64} {
  func.func @_mlp_kernel(%arg0: i32, %arg1: memref<8x200xf32, #tpu.memory_space<vmem>>, %arg2: memref<200x256xbf16, #tpu.memory_space<vmem>>, %arg3: memref<1x256xf32, #tpu.memory_space<vmem>>, %arg4: memref<256x256xbf16, #tpu.memory_space<vmem>>, %arg5: memref<1x256xf32, #tpu.memory_space<vmem>>, %arg6: memref<256x256xbf16, #tpu.memory_space<vmem>>, %arg7: memref<1x256xf32, #tpu.memory_space<vmem>>, %arg8: memref<256x2xbf16, #tpu.memory_space<vmem>>, %arg9: memref<1x2xf32, #tpu.memory_space<vmem>>, %arg10: memref<8x2xf32, #tpu.memory_space<vmem>>) attributes {dimension_semantics = [#tpu.dimension_semantics<parallel>], iteration_bounds = array<i64: 1>, scalar_prefetch = 0 : i64, scratch_operands = 0 : i64, tpu.core_type = #tpu.core_type<tc>, window_params = [{transform_indices = @transform_0, window_bounds = array<i64: 8, 200>}, {pipeline_mode = #tpu.pipeline_mode<synchronous>, transform_indices = @transform_1, window_bounds = array<i64: 200, 256>}, {pipeline_mode = #tpu.pipeline_mode<synchronous>, transform_indices = @transform_2, window_bounds = array<i64: 1, 256>}, {pipeline_mode = #tpu.pipeline_mode<synchronous>, transform_indices = @transform_3, window_bounds = array<i64: 256, 256>}, {pipeline_mode = #tpu.pipeline_mode<synchronous>, transform_indices = @transform_4, window_bounds = array<i64: 1, 256>}, {pipeline_mode = #tpu.pipeline_mode<synchronous>, transform_indices = @transform_5, window_bounds = array<i64: 256, 256>}, {pipeline_mode = #tpu.pipeline_mode<synchronous>, transform_indices = @transform_6, window_bounds = array<i64: 1, 256>}, {pipeline_mode = #tpu.pipeline_mode<synchronous>, transform_indices = @transform_7, window_bounds = array<i64: 256, 2>}, {pipeline_mode = #tpu.pipeline_mode<synchronous>, transform_indices = @transform_8, window_bounds = array<i64: 1, 2>}, {transform_indices = @transform_9, window_bounds = array<i64: 8, 2>}]} {
    %c0 = arith.constant 0 : index
    %c0_0 = arith.constant 0 : index
    %0 = vector.load %arg1[%c0, %c0_0] : memref<8x200xf32, #tpu.memory_space<vmem>>, vector<8x200xf32>
    %1 = arith.truncf %0 : vector<8x200xf32> to vector<8x200xbf16>
    %c0_1 = arith.constant 0 : index
    %c0_2 = arith.constant 0 : index
    %2 = vector.load %arg2[%c0_1, %c0_2] : memref<200x256xbf16, #tpu.memory_space<vmem>>, vector<200x256xbf16>
    %cst = arith.constant dense<0.000000e+00> : vector<8x256xf32>
    %3 = tpu.matmul %1, %2, %cst {dimension_numbers = #tpu.dot_dimension_numbers<[1], [0], [0], [1], [0, 0, 1, 1], [], []>} : vector<8x200xbf16>, vector<200x256xbf16>, vector<8x256xf32> -> vector<8x256xf32>
    %c0_3 = arith.constant 0 : index
    %c0_4 = arith.constant 0 : index
    %4 = vector.load %arg3[%c0_3, %c0_4] : memref<1x256xf32, #tpu.memory_space<vmem>>, vector<1x256xf32>
    %5 = vector.broadcast %4 : vector<1x256xf32> to vector<8x256xf32>
    %6 = arith.addf %3, %5 : vector<8x256xf32>
    %cst_5 = arith.constant 0.000000e+00 : f32
    %7 = vector.broadcast %cst_5 : f32 to vector<8x256xf32>
    %8 = arith.maximumf %6, %7 : vector<8x256xf32>
    %9 = arith.truncf %8 : vector<8x256xf32> to vector<8x256xbf16>
    %c0_6 = arith.constant 0 : index
    %c0_7 = arith.constant 0 : index
    %10 = vector.load %arg4[%c0_6, %c0_7] : memref<256x256xbf16, #tpu.memory_space<vmem>>, vector<256x256xbf16>
    %cst_8 = arith.constant dense<0.000000e+00> : vector<8x256xf32>
    %11 = tpu.matmul %9, %10, %cst_8 {dimension_numbers = #tpu.dot_dimension_numbers<[1], [0], [0], [1], [0, 0, 1, 1], [], []>} : vector<8x256xbf16>, vector<256x256xbf16>, vector<8x256xf32> -> vector<8x256xf32>
    %c0_9 = arith.constant 0 : index
    %c0_10 = arith.constant 0 : index
    %12 = vector.load %arg5[%c0_9, %c0_10] : memref<1x256xf32, #tpu.memory_space<vmem>>, vector<1x256xf32>
    %13 = vector.broadcast %12 : vector<1x256xf32> to vector<8x256xf32>
    %14 = arith.addf %11, %13 : vector<8x256xf32>
    %cst_11 = arith.constant 0.000000e+00 : f32
    %15 = vector.broadcast %cst_11 : f32 to vector<8x256xf32>
    %16 = arith.maximumf %14, %15 : vector<8x256xf32>
    %17 = arith.truncf %16 : vector<8x256xf32> to vector<8x256xbf16>
    %c0_12 = arith.constant 0 : index
    %c0_13 = arith.constant 0 : index
    %18 = vector.load %arg6[%c0_12, %c0_13] : memref<256x256xbf16, #tpu.memory_space<vmem>>, vector<256x256xbf16>
    %cst_14 = arith.constant dense<0.000000e+00> : vector<8x256xf32>
    %19 = tpu.matmul %17, %18, %cst_14 {dimension_numbers = #tpu.dot_dimension_numbers<[1], [0], [0], [1], [0, 0, 1, 1], [], []>} : vector<8x256xbf16>, vector<256x256xbf16>, vector<8x256xf32> -> vector<8x256xf32>
    %c0_15 = arith.constant 0 : index
    %c0_16 = arith.constant 0 : index
    %20 = vector.load %arg7[%c0_15, %c0_16] : memref<1x256xf32, #tpu.memory_space<vmem>>, vector<1x256xf32>
    %21 = vector.broadcast %20 : vector<1x256xf32> to vector<8x256xf32>
    %22 = arith.addf %19, %21 : vector<8x256xf32>
    %cst_17 = arith.constant 0.000000e+00 : f32
    %23 = vector.broadcast %cst_17 : f32 to vector<8x256xf32>
    %24 = arith.maximumf %22, %23 : vector<8x256xf32>
    %25 = arith.truncf %24 : vector<8x256xf32> to vector<8x256xbf16>
    %c0_18 = arith.constant 0 : index
    %c0_19 = arith.constant 0 : index
    %26 = vector.load %arg8[%c0_18, %c0_19] : memref<256x2xbf16, #tpu.memory_space<vmem>>, vector<256x2xbf16>
    %cst_20 = arith.constant dense<0.000000e+00> : vector<8x2xf32>
    %27 = tpu.matmul %25, %26, %cst_20 {dimension_numbers = #tpu.dot_dimension_numbers<[1], [0], [0], [1], [0, 0, 1, 1], [], []>} : vector<8x256xbf16>, vector<256x2xbf16>, vector<8x2xf32> -> vector<8x2xf32>
    %c0_21 = arith.constant 0 : index
    %c0_22 = arith.constant 0 : index
    %28 = vector.load %arg9[%c0_21, %c0_22] : memref<1x2xf32, #tpu.memory_space<vmem>>, vector<1x2xf32>
    %29 = vector.broadcast %28 : vector<1x2xf32> to vector<8x2xf32>
    %30 = arith.addf %27, %29 : vector<8x2xf32>
    %c0_23 = arith.constant 0 : index
    %c0_24 = arith.constant 0 : index
    %31 = vector.load %arg10[%c0_23, %c0_24] : memref<8x2xf32, #tpu.memory_space<vmem>>, vector<8x2xf32>
    tpu.vector_store %arg10[%c0_23, %c0_24], %30 {strides = array<i32>} : memref<8x2xf32, #tpu.memory_space<vmem>>, vector<8x2xf32>,
    return
  }
  func.func @transform_0(%arg0: i32) -> (i32, i32) {
    %c0_i32 = arith.constant 0 : i32
    %c0_i32_0 = arith.constant 0 : i32
    return %arg0, %c0_i32 : i32, i32
  }
  func.func @transform_1(%arg0: i32) -> (i32, i32) {
    %c0_i32 = arith.constant 0 : i32
    %c0_i32_0 = arith.constant 0 : i32
    %c0_i32_1 = arith.constant 0 : i32
    return %c0_i32, %c0_i32_0 : i32, i32
  }
  func.func @transform_2(%arg0: i32) -> (i32, i32) {
    %c0_i32 = arith.constant 0 : i32
    %c0_i32_0 = arith.constant 0 : i32
    %c0_i32_1 = arith.constant 0 : i32
    return %c0_i32, %c0_i32_0 : i32, i32
  }
  func.func @transform_3(%arg0: i32) -> (i32, i32) {
    %c0_i32 = arith.constant 0 : i32
    %c0_i32_0 = arith.constant 0 : i32
    %c0_i32_1 = arith.constant 0 : i32
    return %c0_i32, %c0_i32_0 : i32, i32
  }
  func.func @transform_4(%arg0: i32) -> (i32, i32) {
    %c0_i32 = arith.constant 0 : i32
    %c0_i32_0 = arith.constant 0 : i32
    %c0_i32_1 = arith.constant 0 : i32
    return %c0_i32, %c0_i32_0 : i32, i32
  }
  func.func @transform_5(%arg0: i32) -> (i32, i32) {
    %c0_i32 = arith.constant 0 : i32
    %c0_i32_0 = arith.constant 0 : i32
    %c0_i32_1 = arith.constant 0 : i32
    return %c0_i32, %c0_i32_0 : i32, i32
  }
  func.func @transform_6(%arg0: i32) -> (i32, i32) {
    %c0_i32 = arith.constant 0 : i32
    %c0_i32_0 = arith.constant 0 : i32
    %c0_i32_1 = arith.constant 0 : i32
    return %c0_i32, %c0_i32_0 : i32, i32
  }
  func.func @transform_7(%arg0: i32) -> (i32, i32) {
    %c0_i32 = arith.constant 0 : i32
    %c0_i32_0 = arith.constant 0 : i32
    %c0_i32_1 = arith.constant 0 : i32
    return %c0_i32, %c0_i32_0 : i32, i32
  }
  func.func @transform_8(%arg0: i32) -> (i32, i32) {
    %c0_i32 = arith.constant 0 : i32
    %c0_i32_0 = arith.constant 0 : i32
    %c0_i32_1 = arith.constant 0 : i32
    return %c0_i32, %c0_i32_0 : i32, i32
  }
  func.func @transform_9(%arg0: i32) -> (i32, i32) {
    %c0_i32 = arith.constant 0 : i32
    %c0_i32_0 = arith.constant 0 : i32
    return %arg0, %c0_i32 : i32, i32
  }
}

</mosaic_0001>

<llo_original>
// kernel: eyetracknet_mlp_forward.1
$region0: #{eyetracknet_mlp_forward.1}
  #allocation0 [shape = 'u32[]', space=smem, size = 0x4, offset = 0x4, fixed_abs, tag = 'smem constant byte address 0x4 - core index']
  #allocation1 [shape = 'u32[144,128]{1,0:T(1,128)}', space=vmem, size = 0x12000, scoped, tag = 'internal scratch']
  %s0 = inlined_call_operand.vmem [shape: f32[8,200], index: 0, kind: input, shape index: {}]
  %s1 = inlined_call_operand.hbm [shape: bf16[200,256], index: 1, kind: input, shape index: {}]
  %s2 = inlined_call_operand.vmem [shape: f32[1,256], index: 2, kind: input, shape index: {}]
  %s3 = inlined_call_operand.hbm [shape: bf16[256,256], index: 3, kind: input, shape index: {}]
  %s4 = inlined_call_operand.vmem [shape: f32[1,256], index: 4, kind: input, shape index: {}]
  %s5 = inlined_call_operand.hbm [shape: bf16[256,256], index: 5, kind: input, shape index: {}]
  %s6 = inlined_call_operand.vmem [shape: f32[1,256], index: 6, kind: input, shape index: {}]
  %s7 = inlined_call_operand.vmem [shape: bf16[256,2], index: 7, kind: input, shape index: {}]
  %s8 = inlined_call_operand.vmem [shape: f32[1,2], index: 8, kind: input, shape index: {}]
  %s9 = inlined_call_operand.vmem [shape: f32[8,2], index: 9, kind: output, shape index: {}]
  %s10 = sld [smem:[#allocation0]]
  $region58: #{eyetracknet_mlp_forward.1} parent=0
    _
  %s12 = ssub.s32 1, %s10
  %s13 = scalar_select 0, %s12, %s10
  $region1: #{eyetracknet_mlp_forward.1} parent=0
    #allocation2 [shape = 'u8[102400]{0}', space=vmem, size = 0x19000, scoped, tag = 'input window, operand 1, single buffered']
    #allocation3 [shape = 's32[1]{0}', space=sflag, size = 0x4, scoped, tag = 'scoped memory for eyetracknet_mlp_forward.1']
    #allocation4 [shape = 'u8[131072]{0}', space=vmem, size = 0x20000, scoped, tag = 'input window, operand 3, single buffered']
    #allocation5 [shape = 's32[1]{0}', space=sflag, size = 0x4, scoped, tag = 'scoped memory for eyetracknet_mlp_forward.1']
    #allocation6 [shape = 'u8[131072]{0}', space=vmem, size = 0x20000, scoped, tag = 'input window, operand 5, single buffered']
    %14 = vsyncpa [#allocation3], 0
    %15 = vsyncpa [#allocation5], 0
    // Predicated region
    $region2: #{eyetracknet_mlp_forward.1} parent=1 // pred_check
      _
    $region3: #{eyetracknet_mlp_forward.1} parent=1 // pred_check_branch
      %17 = sbr.rel (0) target = $region5
    $region4: #{eyetracknet_mlp_forward.1} parent=1 // pred_region
      _
    $region5: #{eyetracknet_mlp_forward.1} parent=1 // pred_fallthru
      _
    // Predicated region
    $region6: #{eyetracknet_mlp_forward.1} parent=1 // pred_check
      _
    $region7: #{eyetracknet_mlp_forward.1} parent=1 // pred_check_branch
      %19 = sbr.rel (0) target = $region9
    $region8: #{eyetracknet_mlp_forward.1} parent=1 // pred_region
      %s21 = ssub.s32 3200, 3200
      %22 = vsyncadd [#allocation3], %s21
      %s23 = sshll.u32 [#allocation2], 4
      %s24 = int_to_ptr.vmem [resolvable:$true] %s23
      %29 = dma.hbm_to_vmem [thread:$0]  %s1, 3200, %s24, [#allocation3], 128, 128, 8
    $region9: #{eyetracknet_mlp_forward.1} parent=1 // pred_fallthru
      _
    // Predicated region
    $region10: #{eyetracknet_mlp_forward.1} parent=1 // pred_check
      _
    $region11: #{eyetracknet_mlp_forward.1} parent=1 // pred_check_branch
      %31 = sbr.rel (0) target = $region13
    $region12: #{eyetracknet_mlp_forward.1} parent=1 // pred_region
      _
    $region13: #{eyetracknet_mlp_forward.1} parent=1 // pred_fallthru
      _
    // Predicated region
    $region14: #{eyetracknet_mlp_forward.1} parent=1 // pred_check
      _
    $region15: #{eyetracknet_mlp_forward.1} parent=1 // pred_check_branch
      %33 = sbr.rel (0) target = $region17
    $region16: #{eyetracknet_mlp_forward.1} parent=1 // pred_region
      %s35 = ssub.s32 4096, 4096
      %36 = vsyncadd [#allocation5], %s35
      %s37 = sshll.u32 [#allocation4], 4
      %s38 = int_to_ptr.vmem [resolvable:$true] %s37
      %43 = dma.hbm_to_vmem [thread:$0]  %s3, 4096, %s38, [#allocation5], 128, 128, 8
    $region17: #{eyetracknet_mlp_forward.1} parent=1 // pred_fallthru
      _
    // Predicated region
    $region18: #{eyetracknet_mlp_forward.1} parent=1 // pred_check
      _
    $region19: #{eyetracknet_mlp_forward.1} parent=1 // pred_check_branch
      %45 = sbr.rel (0) target = $region21
    $region20: #{eyetracknet_mlp_forward.1} parent=1 // pred_region
      _
    $region21: #{eyetracknet_mlp_forward.1} parent=1 // pred_fallthru
      _
    // Predicated region
    $region22: #{eyetracknet_mlp_forward.1} parent=1 // pred_check
      _
    $region23: #{eyetracknet_mlp_forward.1} parent=1 // pred_check_branch
      %47 = sbr.rel (0) target = $region25
    $region24: #{eyetracknet_mlp_forward.1} parent=1 // pred_region
      %s49 = ssub.s32 4096, 4096
      %50 = vsyncadd [#allocation5], %s49
      %s51 = sshll.u32 [#allocation6], 4
      %s52 = int_to_ptr.vmem [resolvable:$true] %s51
      %57 = dma.hbm_to_vmem [thread:$0]  %s5, 4096, %s52, [#allocation5], 128, 128, 8
    $region25: #{eyetracknet_mlp_forward.1} parent=1 // pred_fallthru
      _
    // Predicated region
    $region26: #{eyetracknet_mlp_forward.1} parent=1 // pred_check
      _
    $region27: #{eyetracknet_mlp_forward.1} parent=1 // pred_check_branch
      %59 = sbr.rel (0) target = $region29
    $region28: #{eyetracknet_mlp_forward.1} parent=1 // pred_region
      _
    $region29: #{eyetracknet_mlp_forward.1} parent=1 // pred_fallthru
      _
    // Predicated region
    $region30: #{eyetracknet_mlp_forward.1} parent=1 // pred_check
      _
    $region31: #{eyetracknet_mlp_forward.1} parent=1 // pred_check_branch
      %61 = sbr.rel (0) target = $region33
    $region32: #{eyetracknet_mlp_forward.1} parent=1 // pred_region
      _
    $region33: #{eyetracknet_mlp_forward.1} parent=1 // pred_fallthru
      _
    // Predicated region
    $region34: #{eyetracknet_mlp_forward.1} parent=1 // pred_check
      _
    $region35: #{eyetracknet_mlp_forward.1} parent=1 // pred_check_branch
      %63 = sbr.rel (0) target = $region37
    $region36: #{eyetracknet_mlp_forward.1} parent=1 // pred_region
      _
    $region37: #{eyetracknet_mlp_forward.1} parent=1 // pred_fallthru
      _
    // Predicated region
    $region38: #{eyetracknet_mlp_forward.1} parent=1 // pred_check
      _
    $region39: #{eyetracknet_mlp_forward.1} parent=1 // pred_check_branch
      %65 = sbr.rel (0) target = $region41
    $region40: #{eyetracknet_mlp_forward.1} parent=1 // pred_region
      %66 = dma.done [#allocation3], 3200
    $region41: #{eyetracknet_mlp_forward.1} parent=1 // pred_fallthru
      _
    // Predicated region
    $region42: #{eyetracknet_mlp_forward.1} parent=1 // pred_check
      _
    $region43: #{eyetracknet_mlp_forward.1} parent=1 // pred_check_branch
      %68 = sbr.rel (0) target = $region45
    $region44: #{eyetracknet_mlp_forward.1} parent=1 // pred_region
      %69 = dma.done [#allocation5], 4096
    $region45: #{eyetracknet_mlp_forward.1} parent=1 // pred_fallthru
      _
    // Predicated region
    $region46: #{eyetracknet_mlp_forward.1} parent=1 // pred_check
      _
    $region47: #{eyetracknet_mlp_forward.1} parent=1 // pred_check_branch
      %71 = sbr.rel (0) target = $region49
    $region48: #{eyetracknet_mlp_forward.1} parent=1 // pred_region
      %72 = dma.done [#allocation5], 4096
    $region49: #{eyetracknet_mlp_forward.1} parent=1 // pred_fallthru
      _
    %v74 = vld [vmem:[%s0] sm:$0xff]
    %v75 = vld [vmem:[%s0 + $0x8] sm:$0xff]
    %v76 = vpack.c.bf16 %v74, %v74
    %v77 = vpack.c.bf16 %v75, %v75
    %v78 = vld [vmem:[#allocation2] sm:$0xff]
    %v79 = vld [vmem:[#allocation2 + $0x8] sm:$0xff]
    %v80 = vld [vmem:[#allocation2 + $0x10] sm:$0xff]
    %v81 = vld [vmem:[#allocation2 + $0x18] sm:$0xff]
    %v82 = vld [vmem:[#allocation2 + $0x20] sm:$0xff]
    %v83 = vld [vmem:[#allocation2 + $0x28] sm:$0xff]
    %v84 = vld [vmem:[#allocation2 + $0x30] sm:$0xff]
    %v85 = vld [vmem:[#allocation2 + $0x38] sm:$0xff]
    %v86 = vld [vmem:[#allocation2 + $0x40] sm:$0xff]
    %v87 = vld [vmem:[#allocation2 + $0x48] sm:$0xff]
    %v88 = vld [vmem:[#allocation2 + $0x50] sm:$0xff]
    %v89 = vld [vmem:[#allocation2 + $0x58] sm:$0xff]
    %v90 = vld [vmem:[#allocation2 + $0x60] sm:$0xff]
    %v91 = vld [vmem:[#allocation2 + $0x68] sm:$0xff]
    %v92 = vld [vmem:[#allocation2 + $0x70] sm:$0xff]
    %v93 = vld [vmem:[#allocation2 + $0x78] sm:$0xff]
    %v94 = vld [vmem:[#allocation2 + $0x80] sm:$0xff]
    %v95 = vld [vmem:[#allocation2 + $0x88] sm:$0xff]
    %v96 = vld [vmem:[#allocation2 + $0x90] sm:$0xff]
    %v97 = vld [vmem:[#allocation2 + $0x98] sm:$0xff]
    %v98 = vld [vmem:[#allocation2 + $0xa0] sm:$0xff]
    %v99 = vld [vmem:[#allocation2 + $0xa8] sm:$0xff]
    %v100 = vld [vmem:[#allocation2 + $0xb0] sm:$0xff]
    %v101 = vld [vmem:[#allocation2 + $0xb8] sm:$0xff]
    %v102 = vld [vmem:[#allocation2 + $0xc0] sm:$0xff]
    %v103 = vld [vmem:[%s2] sm:$0x3]
    %v105 = vlaneseq
    %v106 = vshrl.u32 %v105, 7
    %v107 = vsub.s32 0, %v106
    %v108 = vrot.slane %v103, %v107
    %v109 = vlaneseq
    %v110 = vshrl.u32 %v109, 7
    %v111 = vsub.s32 1, %v110
    %v112 = vrot.slane %v103, %v111
    %v140 = vunpack.c.l.b16 %v78
    %v141 = vunpack.c.h.b16 %v78
    %v142 = vunpack.c.l.b16 %v79
    %v143 = vunpack.c.h.b16 %v79
    %v144 = vunpack.c.l.b16 %v80
    %v145 = vunpack.c.h.b16 %v80
    %v146 = vunpack.c.l.b16 %v81
    %v147 = vunpack.c.h.b16 %v81
    %v148 = vunpack.c.l.b16 %v82
    %v149 = vunpack.c.h.b16 %v82
    %v150 = vunpack.c.l.b16 %v83
    %v151 = vunpack.c.h.b16 %v83
    %v152 = vunpack.c.l.b16 %v84
    %v153 = vunpack.c.h.b16 %v84
    %v154 = vunpack.c.l.b16 %v85
    %v155 = vunpack.c.h.b16 %v85
    %v156 = vunpack.c.l.b16 %v86
    %v157 = vunpack.c.h.b16 %v86
    %v158 = vunpack.c.l.b16 %v87
    %v159 = vunpack.c.h.b16 %v87
    %v160 = vunpack.c.l.b16 %v88
    %v161 = vunpack.c.h.b16 %v88
    %v162 = vunpack.c.l.b16 %v89
    %v163 = vunpack.c.h.b16 %v89
    %v164 = vunpack.c.l.b16 %v90
    %v165 = vunpack.c.h.b16 %v90
    %v166 = vunpack.c.l.b16 %v91
    %v167 = vunpack.c.h.b16 %v91
    %v168 = vunpack.c.l.b16 %v92
    %v169 = vunpack.c.h.b16 %v92
    %v170 = vunpack.c.l.b16 %v93
    %v171 = vunpack.c.h.b16 %v93
    %v172 = vunpack.c.l.b16 %v94
    %v173 = vunpack.c.h.b16 %v94
    %v174 = vunpack.c.l.b16 %v95
    %v175 = vunpack.c.h.b16 %v95
    %v176 = vunpack.c.l.b16 %v96
    %v177 = vunpack.c.h.b16 %v96
    %v178 = vunpack.c.l.b16 %v97
    %v179 = vunpack.c.h.b16 %v97
    %v180 = vunpack.c.l.b16 %v98
    %v181 = vunpack.c.h.b16 %v98
    %v182 = vunpack.c.l.b16 %v99
    %v183 = vunpack.c.h.b16 %v99
    %v184 = vunpack.c.l.b16 %v100
    %v185 = vunpack.c.h.b16 %v100
    %v186 = vunpack.c.l.b16 %v101
    %v187 = vunpack.c.h.b16 %v101
    %v188 = vunpack.c.l.b16 %v102
    %v189 = vunpack.c.h.b16 %v102
    %v190 = vpack.c.b16 %v142, %v140
    %v191 = vpack.c.b16 %v143, %v141
    %v192 = vpack.c.b16 %v146, %v144
    %v193 = vpack.c.b16 %v147, %v145
    %v194 = vpack.c.b16 %v150, %v148
    %v195 = vpack.c.b16 %v151, %v149
    %v196 = vpack.c.b16 %v154, %v152
    %v197 = vpack.c.b16 %v155, %v153
    %v198 = vpack.c.b16 %v158, %v156
    %v199 = vpack.c.b16 %v159, %v157
    %v200 = vpack.c.b16 %v162, %v160
    %v201 = vpack.c.b16 %v163, %v161
    %v202 = vpack.c.b16 %v166, %v164
    %v203 = vpack.c.b16 %v167, %v165
    %v204 = vpack.c.b16 %v170, %v168
    %v205 = vpack.c.b16 %v171, %v169
    %v206 = vpack.c.b16 %v174, %v172
    %v207 = vpack.c.b16 %v175, %v173
    %v208 = vpack.c.b16 %v178, %v176
    %v209 = vpack.c.b16 %v179, %v177
    %v210 = vpack.c.b16 %v182, %v180
    %v211 = vpack.c.b16 %v183, %v181
    %v212 = vpack.c.b16 %v186, %v184
    %v213 = vpack.c.b16 %v187, %v185
    %v214 = vpack.c.b16 %v188, %v188
    %v215 = vpack.c.b16 %v189, %v189
    %vm240 = vcmask 588800
    %v242 = vsel %vm240, %v77, 0
    %vm244 = vcmask 1043456
    %v246 = vsel %vm244, %v214, 0
    %v249 = vsel %vm244, %v215, 0
    %251 = vmatprep.subr.bf16.mxu0 %v191
    %252 = vmatpush1.bf16.msra.mxu0 %v190
    %253 = vmatprep.subr.bf16.mxu0 %v193
    %254 = vmatpush1.bf16.msra.mxu0 %v192
    %255 = vmatprep.subr.bf16.mxu0 %v195
    %256 = vmatpush1.bf16.msra.mxu0 %v194
    %257 = vmatprep.subr.bf16.mxu0 %v197
    %258 = vmatpush1.bf16.msra.mxu0 %v196
    %259 = vmatprep.subr.bf16.mxu0 %v199
    %260 = vmatpush1.bf16.msra.mxu0 %v198
    %261 = vmatprep.subr.bf16.mxu0 %v201
    %262 = vmatpush1.bf16.msra.mxu0 %v200
    %263 = vmatprep.subr.bf16.mxu0 %v203
    %264 = vmatpush1.bf16.msra.mxu0 %v202
    %265 = vmatprep.subr.bf16.mxu0 %v205
    %266 = vmatpush1.bf16.msra.mxu0 %v204
    %267 = vmatprep.subr.bf16.mxu0 %v207
    %268 = vmatpush1.bf16.msra.mxu0 %v206
    %269 = vmatprep.subr.bf16.mxu0 %v209
    %270 = vmatpush1.bf16.msra.mxu0 %v208
    %271 = vmatprep.subr.bf16.mxu0 %v211
    %272 = vmatpush1.bf16.msra.mxu0 %v210
    %273 = vmatprep.subr.bf16.mxu0 %v213
    %274 = vmatpush1.bf16.msra.mxu0 %v212
    %275 = vmatprep.subr.bf16.mxu0 %v249
    %276 = vmatpush1.bf16.msra.mxu0 %v246
    %277 = vmatprep.subr.bf16.mxu0 0
    %278 = vmatpush1.bf16.msra.mxu0 0
    %279 = vmatprep.subr.bf16.mxu0 0
    %280 = vmatpush1.bf16.msra.mxu0 0
    %281 = vmatprep.subr.bf16.mxu0 0
    %282 = vmatpush1.bf16.msra.mxu0 0
    %283 = vmatprep.mubr.bf16.mxu0 %v242
    %284 = vmatmul.mubr.bf16.gmra.mrb[0].mxu0 %v76
    %v285 = vpop.f32.mrb[0].mxu0
    %v286 = vadd.f32 %v108, %v285
    %v287 = vpop.f32.mrb[0].mxu0
    %v288 = vadd.f32 %v112, %v287
    %v289 = vpop.f32.mrb[0].mxu0
    %v290 = vpop.f32.mrb[0].mxu0
    %291 = vdwg.mxu0
    %v292 = vmax.f32 %v286, 0.0
    %v293 = vmax.f32 %v288, 0.0
    %v294 = vpack.c.bf16 %v292, %v292
    %v295 = vpack.c.bf16 %v293, %v293
    %v296 = vld [vmem:[#allocation4] sm:$0xff]
    %v297 = vld [vmem:[#allocation4 + $0x8] sm:$0xff]
    %v298 = vld [vmem:[#allocation4 + $0x10] sm:$0xff]
    %v299 = vld [vmem:[#allocation4 + $0x18] sm:$0xff]
    %v300 = vld [vmem:[#allocation4 + $0x20] sm:$0xff]
    %v301 = vld [vmem:[#allocation4 + $0x28] sm:$0xff]
    %v302 = vld [vmem:[#allocation4 + $0x30] sm:$0xff]
    %v303 = vld [vmem:[#allocation4 + $0x38] sm:$0xff]
    %v304 = vld [vmem:[#allocation4 + $0x40] sm:$0xff]
    %v305 = vld [vmem:[#allocation4 + $0x48] sm:$0xff]
    %v306 = vld [vmem:[#allocation4 + $0x50] sm:$0xff]
    %v307 = vld [vmem:[#allocation4 + $0x58] sm:$0xff]
    %v308 = vld [vmem:[#allocation4 + $0x60] sm:$0xff]
    %v309 = vld [vmem:[#allocation4 + $0x68] sm:$0xff]
    %v310 = vld [vmem:[#allocation4 + $0x70] sm:$0xff]
    %v311 = vld [vmem:[#allocation4 + $0x78] sm:$0xff]
    %v312 = vld [vmem:[#allocation4 + $0x80] sm:$0xff]
    %v313 = vld [vmem:[#allocation4 + $0x88] sm:$0xff]
    %v314 = vld [vmem:[#allocation4 + $0x90] sm:$0xff]
    %v315 = vld [vmem:[#allocation4 + $0x98] sm:$0xff]
    %v316 = vld [vmem:[#allocation4 + $0xa0] sm:$0xff]
    %v317 = vld [vmem:[#allocation4 + $0xa8] sm:$0xff]
    %v318 = vld [vmem:[#allocation4 + $0xb0] sm:$0xff]
    %v319 = vld [vmem:[#allocation4 + $0xb8] sm:$0xff]
    %v320 = vld [vmem:[#allocation4 + $0xc0] sm:$0xff]
    %v321 = vld [vmem:[#allocation4 + $0xc8] sm:$0xff]
    %v322 = vld [vmem:[#allocation4 + $0xd0] sm:$0xff]
    %v323 = vld [vmem:[#allocation4 + $0xd8] sm:$0xff]
    %v324 = vld [vmem:[#allocation4 + $0xe0] sm:$0xff]
    %v325 = vld [vmem:[#allocation4 + $0xe8] sm:$0xff]
    %v326 = vld [vmem:[#allocation4 + $0xf0] sm:$0xff]
    %v327 = vld [vmem:[#allocation4 + $0xf8] sm:$0xff]
    %v328 = vld [vmem:[%s4] sm:$0x3]
    %v330 = vlaneseq
    %v331 = vshrl.u32 %v330, 7
    %v332 = vsub.s32 0, %v331
    %v333 = vrot.slane %v328, %v332
    %v334 = vlaneseq
    %v335 = vshrl.u32 %v334, 7
    %v336 = vsub.s32 1, %v335
    %v337 = vrot.slane %v328, %v336
    %v372 = vunpack.c.l.b16 %v296
    %v373 = vunpack.c.h.b16 %v296
    %v374 = vunpack.c.l.b16 %v297
    %v375 = vunpack.c.h.b16 %v297
    %v376 = vunpack.c.l.b16 %v298
    %v377 = vunpack.c.h.b16 %v298
    %v378 = vunpack.c.l.b16 %v299
    %v379 = vunpack.c.h.b16 %v299
    %v380 = vunpack.c.l.b16 %v300
    %v381 = vunpack.c.h.b16 %v300
    %v382 = vunpack.c.l.b16 %v301
    %v383 = vunpack.c.h.b16 %v301
    %v384 = vunpack.c.l.b16 %v302
    %v385 = vunpack.c.h.b16 %v302
    %v386 = vunpack.c.l.b16 %v303
    %v387 = vunpack.c.h.b16 %v303
    %v388 = vunpack.c.l.b16 %v304
    %v389 = vunpack.c.h.b16 %v304
    %v390 = vunpack.c.l.b16 %v305
    %v391 = vunpack.c.h.b16 %v305
    %v392 = vunpack.c.l.b16 %v306
    %v393 = vunpack.c.h.b16 %v306
    %v394 = vunpack.c.l.b16 %v307
    %v395 = vunpack.c.h.b16 %v307
    %v396 = vunpack.c.l.b16 %v308
    %v397 = vunpack.c.h.b16 %v308
    %v398 = vunpack.c.l.b16 %v309
    %v399 = vunpack.c.h.b16 %v309
    %v400 = vunpack.c.l.b16 %v310
    %v401 = vunpack.c.h.b16 %v310
    %v402 = vunpack.c.l.b16 %v311
    %v403 = vunpack.c.h.b16 %v311
    %v404 = vunpack.c.l.b16 %v312
    %v405 = vunpack.c.h.b16 %v312
    %v406 = vunpack.c.l.b16 %v313
    %v407 = vunpack.c.h.b16 %v313
    %v408 = vunpack.c.l.b16 %v314
    %v409 = vunpack.c.h.b16 %v314
    %v410 = vunpack.c.l.b16 %v315
    %v411 = vunpack.c.h.b16 %v315
    %v412 = vunpack.c.l.b16 %v316
    %v413 = vunpack.c.h.b16 %v316
    %v414 = vunpack.c.l.b16 %v317
    %v415 = vunpack.c.h.b16 %v317
    %v416 = vunpack.c.l.b16 %v318
    %v417 = vunpack.c.h.b16 %v318
    %v418 = vunpack.c.l.b16 %v319
    %v419 = vunpack.c.h.b16 %v319
    %v420 = vunpack.c.l.b16 %v320
    %v421 = vunpack.c.h.b16 %v320
    %v422 = vunpack.c.l.b16 %v321
    %v423 = vunpack.c.h.b16 %v321
    %v424 = vunpack.c.l.b16 %v322
    %v425 = vunpack.c.h.b16 %v322
    %v426 = vunpack.c.l.b16 %v323
    %v427 = vunpack.c.h.b16 %v323
    %v428 = vunpack.c.l.b16 %v324
    %v429 = vunpack.c.h.b16 %v324
    %v430 = vunpack.c.l.b16 %v325
    %v431 = vunpack.c.h.b16 %v325
    %v432 = vunpack.c.l.b16 %v326
    %v433 = vunpack.c.h.b16 %v326
    %v434 = vunpack.c.l.b16 %v327
    %v435 = vunpack.c.h.b16 %v327
    %v436 = vpack.c.b16 %v374, %v372
    %v437 = vpack.c.b16 %v375, %v373
    %v438 = vpack.c.b16 %v378, %v376
    %v439 = vpack.c.b16 %v379, %v377
    %v440 = vpack.c.b16 %v382, %v380
    %v441 = vpack.c.b16 %v383, %v381
    %v442 = vpack.c.b16 %v386, %v384
    %v443 = vpack.c.b16 %v387, %v385
    %v444 = vpack.c.b16 %v390, %v388
    %v445 = vpack.c.b16 %v391, %v389
    %v446 = vpack.c.b16 %v394, %v392
    %v447 = vpack.c.b16 %v395, %v393
    %v448 = vpack.c.b16 %v398, %v396
    %v449 = vpack.c.b16 %v399, %v397
    %v450 = vpack.c.b16 %v402, %v400
    %v451 = vpack.c.b16 %v403, %v401
    %v452 = vpack.c.b16 %v406, %v404
    %v453 = vpack.c.b16 %v407, %v405
    %v454 = vpack.c.b16 %v410, %v408
    %v455 = vpack.c.b16 %v411, %v409
    %v456 = vpack.c.b16 %v414, %v412
    %v457 = vpack.c.b16 %v415, %v413
    %v458 = vpack.c.b16 %v418, %v416
    %v459 = vpack.c.b16 %v419, %v417
    %v460 = vpack.c.b16 %v422, %v420
    %v461 = vpack.c.b16 %v423, %v421
    %v462 = vpack.c.b16 %v426, %v424
    %v463 = vpack.c.b16 %v427, %v425
    %v464 = vpack.c.b16 %v430, %v428
    %v465 = vpack.c.b16 %v431, %v429
    %v466 = vpack.c.b16 %v434, %v432
    %v467 = vpack.c.b16 %v435, %v433
    %500 = vmatprep.subr.bf16.mxu0 %v437
    %501 = vmatpush1.bf16.msra.mxu0 %v436
    %502 = vmatprep.subr.bf16.mxu0 %v439
    %503 = vmatpush1.bf16.msra.mxu0 %v438
    %504 = vmatprep.subr.bf16.mxu0 %v441
    %505 = vmatpush1.bf16.msra.mxu0 %v440
    %506 = vmatprep.subr.bf16.mxu0 %v443
    %507 = vmatpush1.bf16.msra.mxu0 %v442
    %508 = vmatprep.subr.bf16.mxu0 %v445
    %509 = vmatpush1.bf16.msra.mxu0 %v444
    %510 = vmatprep.subr.bf16.mxu0 %v447
    %511 = vmatpush1.bf16.msra.mxu0 %v446
    %512 = vmatprep.subr.bf16.mxu0 %v449
    %513 = vmatpush1.bf16.msra.mxu0 %v448
    %514 = vmatprep.subr.bf16.mxu0 %v451
    %515 = vmatpush1.bf16.msra.mxu0 %v450
    %516 = vmatprep.subr.bf16.mxu0 %v453
    %517 = vmatpush1.bf16.msra.mxu0 %v452
    %518 = vmatprep.subr.bf16.mxu0 %v455
    %519 = vmatpush1.bf16.msra.mxu0 %v454
    %520 = vmatprep.subr.bf16.mxu0 %v457
    %521 = vmatpush1.bf16.msra.mxu0 %v456
    %522 = vmatprep.subr.bf16.mxu0 %v459
    %523 = vmatpush1.bf16.msra.mxu0 %v458
    %524 = vmatprep.subr.bf16.mxu0 %v461
    %525 = vmatpush1.bf16.msra.mxu0 %v460
    %526 = vmatprep.subr.bf16.mxu0 %v463
    %527 = vmatpush1.bf16.msra.mxu0 %v462
    %528 = vmatprep.subr.bf16.mxu0 %v465
    %529 = vmatpush1.bf16.msra.mxu0 %v464
    %530 = vmatprep.subr.bf16.mxu0 %v467
    %531 = vmatpush1.bf16.msra.mxu0 %v466
    %532 = vmatprep.mubr.bf16.mxu0 %v295
    %533 = vmatmul.mubr.bf16.gmra.mrb[0].mxu0 %v294
    %v534 = vpop.f32.mrb[0].mxu0
    %v535 = vadd.f32 %v333, %v534
    %v536 = vpop.f32.mrb[0].mxu0
    %v537 = vadd.f32 %v337, %v536
    %v538 = vpop.f32.mrb[0].mxu0
    %v539 = vpop.f32.mrb[0].mxu0
    %540 = vdwg.mxu0
    %v541 = vmax.f32 %v535, 0.0
    %v542 = vmax.f32 %v537, 0.0
    %v543 = vpack.c.bf16 %v541, %v541
    %v544 = vpack.c.bf16 %v542, %v542
    %v545 = vld [vmem:[#allocation6] sm:$0xff]
    %v546 = vld [vmem:[#allocation6 + $0x8] sm:$0xff]
    %v547 = vld [vmem:[#allocation6 + $0x10] sm:$0xff]
    %v548 = vld [vmem:[#allocation6 + $0x18] sm:$0xff]
    %v549 = vld [vmem:[#allocation6 + $0x20] sm:$0xff]
    %v550 = vld [vmem:[#allocation6 + $0x28] sm:$0xff]
    %v551 = vld [vmem:[#allocation6 + $0x30] sm:$0xff]
    %v552 = vld [vmem:[#allocation6 + $0x38] sm:$0xff]
    %v553 = vld [vmem:[#allocation6 + $0x40] sm:$0xff]
    %v554 = vld [vmem:[#allocation6 + $0x48] sm:$0xff]
    %v555 = vld [vmem:[#allocation6 + $0x50] sm:$0xff]
    %v556 = vld [vmem:[#allocation6 + $0x58] sm:$0xff]
    %v557 = vld [vmem:[#allocation6 + $0x60] sm:$0xff]
    %v558 = vld [vmem:[#allocation6 + $0x68] sm:$0xff]
    %v559 = vld [vmem:[#allocation6 + $0x70] sm:$0xff]
    %v560 = vld [vmem:[#allocation6 + $0x78] sm:$0xff]
    %v561 = vld [vmem:[#allocation6 + $0x80] sm:$0xff]
    %v562 = vld [vmem:[#allocation6 + $0x88] sm:$0xff]
    %v563 = vld [vmem:[#allocation6 + $0x90] sm:$0xff]
    %v564 = vld [vmem:[#allocation6 + $0x98] sm:$0xff]
    %v565 = vld [vmem:[#allocation6 + $0xa0] sm:$0xff]
    %v566 = vld [vmem:[#allocation6 + $0xa8] sm:$0xff]
    %v567 = vld [vmem:[#allocation6 + $0xb0] sm:$0xff]
    %v568 = vld [vmem:[#allocation6 + $0xb8] sm:$0xff]
    %v569 = vld [vmem:[#allocation6 + $0xc0] sm:$0xff]
    %v570 = vld [vmem:[#allocation6 + $0xc8] sm:$0xff]
    %v571 = vld [vmem:[#allocation6 + $0xd0] sm:$0xff]
    %v572 = vld [vmem:[#allocation6 + $0xd8] sm:$0xff]
    %v573 = vld [vmem:[#allocation6 + $0xe0] sm:$0xff]
    %v574 = vld [vmem:[#allocation6 + $0xe8] sm:$0xff]
    %v575 = vld [vmem:[#allocation6 + $0xf0] sm:$0xff]
    %v576 = vld [vmem:[#allocation6 + $0xf8] sm:$0xff]
    %v577 = vld [vmem:[%s6] sm:$0x3]
    %v579 = vlaneseq
    %v580 = vshrl.u32 %v579, 7
    %v581 = vsub.s32 0, %v580
    %v582 = vrot.slane %v577, %v581
    %v583 = vlaneseq
    %v584 = vshrl.u32 %v583, 7
    %v585 = vsub.s32 1, %v584
    %v586 = vrot.slane %v577, %v585
    %v621 = vunpack.c.l.b16 %v545
    %v622 = vunpack.c.h.b16 %v545
    %v623 = vunpack.c.l.b16 %v546
    %v624 = vunpack.c.h.b16 %v546
    %v625 = vunpack.c.l.b16 %v547
    %v626 = vunpack.c.h.b16 %v547
    %v627 = vunpack.c.l.b16 %v548
    %v628 = vunpack.c.h.b16 %v548
    %v629 = vunpack.c.l.b16 %v549
    %v630 = vunpack.c.h.b16 %v549
    %v631 = vunpack.c.l.b16 %v550
    %v632 = vunpack.c.h.b16 %v550
    %v633 = vunpack.c.l.b16 %v551
    %v634 = vunpack.c.h.b16 %v551
    %v635 = vunpack.c.l.b16 %v552
    %v636 = vunpack.c.h.b16 %v552
    %v637 = vunpack.c.l.b16 %v553
    %v638 = vunpack.c.h.b16 %v553
    %v639 = vunpack.c.l.b16 %v554
    %v640 = vunpack.c.h.b16 %v554
    %v641 = vunpack.c.l.b16 %v555
    %v642 = vunpack.c.h.b16 %v555
    %v643 = vunpack.c.l.b16 %v556
    %v644 = vunpack.c.h.b16 %v556
    %v645 = vunpack.c.l.b16 %v557
    %v646 = vunpack.c.h.b16 %v557
    %v647 = vunpack.c.l.b16 %v558
    %v648 = vunpack.c.h.b16 %v558
    %v649 = vunpack.c.l.b16 %v559
    %v650 = vunpack.c.h.b16 %v559
    %v651 = vunpack.c.l.b16 %v560
    %v652 = vunpack.c.h.b16 %v560
    %v653 = vunpack.c.l.b16 %v561
    %v654 = vunpack.c.h.b16 %v561
    %v655 = vunpack.c.l.b16 %v562
    %v656 = vunpack.c.h.b16 %v562
    %v657 = vunpack.c.l.b16 %v563
    %v658 = vunpack.c.h.b16 %v563
    %v659 = vunpack.c.l.b16 %v564
    %v660 = vunpack.c.h.b16 %v564
    %v661 = vunpack.c.l.b16 %v565
    %v662 = vunpack.c.h.b16 %v565
    %v663 = vunpack.c.l.b16 %v566
    %v664 = vunpack.c.h.b16 %v566
    %v665 = vunpack.c.l.b16 %v567
    %v666 = vunpack.c.h.b16 %v567
    %v667 = vunpack.c.l.b16 %v568
    %v668 = vunpack.c.h.b16 %v568
    %v669 = vunpack.c.l.b16 %v569
    %v670 = vunpack.c.h.b16 %v569
    %v671 = vunpack.c.l.b16 %v570
    %v672 = vunpack.c.h.b16 %v570
    %v673 = vunpack.c.l.b16 %v571
    %v674 = vunpack.c.h.b16 %v571
    %v675 = vunpack.c.l.b16 %v572
    %v676 = vunpack.c.h.b16 %v572
    %v677 = vunpack.c.l.b16 %v573
    %v678 = vunpack.c.h.b16 %v573
    %v679 = vunpack.c.l.b16 %v574
    %v680 = vunpack.c.h.b16 %v574
    %v681 = vunpack.c.l.b16 %v575
    %v682 = vunpack.c.h.b16 %v575
    %v683 = vunpack.c.l.b16 %v576
    %v684 = vunpack.c.h.b16 %v576
    %v685 = vpack.c.b16 %v623, %v621
    %v686 = vpack.c.b16 %v624, %v622
    %v687 = vpack.c.b16 %v627, %v625
    %v688 = vpack.c.b16 %v628, %v626
    %v689 = vpack.c.b16 %v631, %v629
    %v690 = vpack.c.b16 %v632, %v630
    %v691 = vpack.c.b16 %v635, %v633
    %v692 = vpack.c.b16 %v636, %v634
    %v693 = vpack.c.b16 %v639, %v637
    %v694 = vpack.c.b16 %v640, %v638
    %v695 = vpack.c.b16 %v643, %v641
    %v696 = vpack.c.b16 %v644, %v642
    %v697 = vpack.c.b16 %v647, %v645
    %v698 = vpack.c.b16 %v648, %v646
    %v699 = vpack.c.b16 %v651, %v649
    %v700 = vpack.c.b16 %v652, %v650
    %v701 = vpack.c.b16 %v655, %v653
    %v702 = vpack.c.b16 %v656, %v654
    %v703 = vpack.c.b16 %v659, %v657
    %v704 = vpack.c.b16 %v660, %v658
    %v705 = vpack.c.b16 %v663, %v661
    %v706 = vpack.c.b16 %v664, %v662
    %v707 = vpack.c.b16 %v667, %v665
    %v708 = vpack.c.b16 %v668, %v666
    %v709 = vpack.c.b16 %v671, %v669
    %v710 = vpack.c.b16 %v672, %v670
    %v711 = vpack.c.b16 %v675, %v673
    %v712 = vpack.c.b16 %v676, %v674
    %v713 = vpack.c.b16 %v679, %v677
    %v714 = vpack.c.b16 %v680, %v678
    %v715 = vpack.c.b16 %v683, %v681
    %v716 = vpack.c.b16 %v684, %v682
    %749 = vmatprep.subr.bf16.mxu0 %v686
    %750 = vmatpush1.bf16.msra.mxu0 %v685
    %751 = vmatprep.subr.bf16.mxu0 %v688
    %752 = vmatpush1.bf16.msra.mxu0 %v687
    %753 = vmatprep.subr.bf16.mxu0 %v690
    %754 = vmatpush1.bf16.msra.mxu0 %v689
    %755 = vmatprep.subr.bf16.mxu0 %v692
    %756 = vmatpush1.bf16.msra.mxu0 %v691
    %757 = vmatprep.subr.bf16.mxu0 %v694
    %758 = vmatpush1.bf16.msra.mxu0 %v693
    %759 = vmatprep.subr.bf16.mxu0 %v696
    %760 = vmatpush1.bf16.msra.mxu0 %v695
    %761 = vmatprep.subr.bf16.mxu0 %v698
    %762 = vmatpush1.bf16.msra.mxu0 %v697
    %763 = vmatprep.subr.bf16.mxu0 %v700
    %764 = vmatpush1.bf16.msra.mxu0 %v699
    %765 = vmatprep.subr.bf16.mxu0 %v702
    %766 = vmatpush1.bf16.msra.mxu0 %v701
    %767 = vmatprep.subr.bf16.mxu0 %v704
    %768 = vmatpush1.bf16.msra.mxu0 %v703
    %769 = vmatprep.subr.bf16.mxu0 %v706
    %770 = vmatpush1.bf16.msra.mxu0 %v705
    %771 = vmatprep.subr.bf16.mxu0 %v708
    %772 = vmatpush1.bf16.msra.mxu0 %v707
    %773 = vmatprep.subr.bf16.mxu0 %v710
    %774 = vmatpush1.bf16.msra.mxu0 %v709
    %775 = vmatprep.subr.bf16.mxu0 %v712
    %776 = vmatpush1.bf16.msra.mxu0 %v711
    %777 = vmatprep.subr.bf16.mxu0 %v714
    %778 = vmatpush1.bf16.msra.mxu0 %v713
    %779 = vmatprep.subr.bf16.mxu0 %v716
    %780 = vmatpush1.bf16.msra.mxu0 %v715
    %781 = vmatprep.mubr.bf16.mxu0 %v544
    %782 = vmatmul.mubr.bf16.gmra.mrb[0].mxu0 %v543
    %v783 = vpop.f32.mrb[0].mxu0
    %v784 = vadd.f32 %v582, %v783
    %v785 = vpop.f32.mrb[0].mxu0
    %v786 = vadd.f32 %v586, %v785
    %v787 = vpop.f32.mrb[0].mxu0
    %v788 = vpop.f32.mrb[0].mxu0
    %789 = vdwg.mxu0
    %v790 = vmax.f32 %v784, 0.0
    %v791 = vmax.f32 %v786, 0.0
    %v792 = vpack.c.bf16 %v790, %v790
    %v793 = vpack.c.bf16 %v791, %v791
    %v794 = vld [vmem:[%s7] sm:$0xf]
    %v795 = vld [vmem:[%s7 + $0x4] sm:$0xf]
    %v796 = vld [vmem:[%s7 + $0x8] sm:$0xf]
    %v797 = vld [vmem:[%s7 + $0xc] sm:$0xf]
    %v798 = vld [vmem:[%s7 + $0x10] sm:$0xf]
    %v799 = vld [vmem:[%s7 + $0x14] sm:$0xf]
    %v800 = vld [vmem:[%s7 + $0x18] sm:$0xf]
    %v801 = vld [vmem:[%s7 + $0x1c] sm:$0xf]
    %v802 = vld [vmem:[%s7 + $0x20] sm:$0xf]
    %v803 = vld [vmem:[%s7 + $0x24] sm:$0xf]
    %v804 = vld [vmem:[%s7 + $0x28] sm:$0xf]
    %v805 = vld [vmem:[%s7 + $0x2c] sm:$0xf]
    %v806 = vld [vmem:[%s7 + $0x30] sm:$0xf]
    %v807 = vld [vmem:[%s7 + $0x34] sm:$0xf]
    %v808 = vld [vmem:[%s7 + $0x38] sm:$0xf]
    %v809 = vld [vmem:[%s7 + $0x3c] sm:$0xf]
    %v810 = vld [vmem:[%s7 + $0x40] sm:$0xf]
    %v811 = vld [vmem:[%s7 + $0x44] sm:$0xf]
    %v812 = vld [vmem:[%s7 + $0x48] sm:$0xf]
    %v813 = vld [vmem:[%s7 + $0x4c] sm:$0xf]
    %v814 = vld [vmem:[%s7 + $0x50] sm:$0xf]
    %v815 = vld [vmem:[%s7 + $0x54] sm:$0xf]
    %v816 = vld [vmem:[%s7 + $0x58] sm:$0xf]
    %v817 = vld [vmem:[%s7 + $0x5c] sm:$0xf]
    %v818 = vld [vmem:[%s7 + $0x60] sm:$0xf]
    %v819 = vld [vmem:[%s7 + $0x64] sm:$0xf]
    %v820 = vld [vmem:[%s7 + $0x68] sm:$0xf]
    %v821 = vld [vmem:[%s7 + $0x6c] sm:$0xf]
    %v822 = vld [vmem:[%s7 + $0x70] sm:$0xf]
    %v823 = vld [vmem:[%s7 + $0x74] sm:$0xf]
    %v824 = vld [vmem:[%s7 + $0x78] sm:$0xf]
    %v825 = vld [vmem:[%s7 + $0x7c] sm:$0xf]
    %v826 = vld [vmem:[%s8] sm:$0x1]
    %v828 = vlaneseq
    %v829 = vshrl.u32 %v828, 7
    %v830 = vsub.s32 0, %v829
    %v831 = vrot.slane %v826, %v830
    %v865 = vunpack.c.l.b16 %v794
    %v866 = vunpack.c.l.b16 %v795
    %v867 = vunpack.c.l.b16 %v796
    %v868 = vunpack.c.l.b16 %v797
    %v869 = vunpack.c.l.b16 %v798
    %v870 = vunpack.c.l.b16 %v799
    %v871 = vunpack.c.l.b16 %v800
    %v872 = vunpack.c.l.b16 %v801
    %v873 = vunpack.c.l.b16 %v802
    %v874 = vunpack.c.l.b16 %v803
    %v875 = vunpack.c.l.b16 %v804
    %v876 = vunpack.c.l.b16 %v805
    %v877 = vunpack.c.l.b16 %v806
    %v878 = vunpack.c.l.b16 %v807
    %v879 = vunpack.c.l.b16 %v808
    %v880 = vunpack.c.l.b16 %v809
    %v881 = vunpack.c.l.b16 %v810
    %v882 = vunpack.c.l.b16 %v811
    %v883 = vunpack.c.l.b16 %v812
    %v884 = vunpack.c.l.b16 %v813
    %v885 = vunpack.c.l.b16 %v814
    %v886 = vunpack.c.l.b16 %v815
    %v887 = vunpack.c.l.b16 %v816
    %v888 = vunpack.c.l.b16 %v817
    %v889 = vunpack.c.l.b16 %v818
    %v890 = vunpack.c.l.b16 %v819
    %v891 = vunpack.c.l.b16 %v820
    %v892 = vunpack.c.l.b16 %v821
    %v893 = vunpack.c.l.b16 %v822
    %v894 = vunpack.c.l.b16 %v823
    %v895 = vunpack.c.l.b16 %v824
    %v896 = vunpack.c.l.b16 %v825
    %v897 = vpack.c.b16 %v866, %v865
    %v898 = vpack.c.b16 %v868, %v867
    %v899 = vpack.c.b16 %v870, %v869
    %v900 = vpack.c.b16 %v872, %v871
    %v901 = vpack.c.b16 %v874, %v873
    %v902 = vpack.c.b16 %v876, %v875
    %v903 = vpack.c.b16 %v878, %v877
    %v904 = vpack.c.b16 %v880, %v879
    %v905 = vpack.c.b16 %v882, %v881
    %v906 = vpack.c.b16 %v884, %v883
    %v907 = vpack.c.b16 %v886, %v885
    %v908 = vpack.c.b16 %v888, %v887
    %v909 = vpack.c.b16 %v890, %v889
    %v910 = vpack.c.b16 %v892, %v891
    %v911 = vpack.c.b16 %v894, %v893
    %v912 = vpack.c.b16 %v896, %v895
    %929 = vmatprep.subr.bf16.mxu0 0
    %930 = vmatpush1.bf16.msra.mxu0 %v897
    %931 = vmatprep.subr.bf16.mxu0 0
    %932 = vmatpush1.bf16.msra.mxu0 %v898
    %933 = vmatprep.subr.bf16.mxu0 0
    %934 = vmatpush1.bf16.msra.mxu0 %v899
    %935 = vmatprep.subr.bf16.mxu0 0
    %936 = vmatpush1.bf16.msra.mxu0 %v900
    %937 = vmatprep.subr.bf16.mxu0 0
    %938 = vmatpush1.bf16.msra.mxu0 %v901
    %939 = vmatprep.subr.bf16.mxu0 0
    %940 = vmatpush1.bf16.msra.mxu0 %v902
    %941 = vmatprep.subr.bf16.mxu0 0
    %942 = vmatpush1.bf16.msra.mxu0 %v903
    %943 = vmatprep.subr.bf16.mxu0 0
    %944 = vmatpush1.bf16.msra.mxu0 %v904
    %945 = vmatprep.subr.bf16.mxu0 0
    %946 = vmatpush1.bf16.msra.mxu0 %v905
    %947 = vmatprep.subr.bf16.mxu0 0
    %948 = vmatpush1.bf16.msra.mxu0 %v906
    %949 = vmatprep.subr.bf16.mxu0 0
    %950 = vmatpush1.bf16.msra.mxu0 %v907
    %951 = vmatprep.subr.bf16.mxu0 0
    %952 = vmatpush1.bf16.msra.mxu0 %v908
    %953 = vmatprep.subr.bf16.mxu0 0
    %954 = vmatpush1.bf16.msra.mxu0 %v909
    %955 = vmatprep.subr.bf16.mxu0 0
    %956 = vmatpush1.bf16.msra.mxu0 %v910
    %957 = vmatprep.subr.bf16.mxu0 0
    %958 = vmatpush1.bf16.msra.mxu0 %v911
    %959 = vmatprep.subr.bf16.mxu0 0
    %960 = vmatpush1.bf16.msra.mxu0 %v912
    %961 = vmatprep.mubr.bf16.mxu0 %v793
    %962 = vmatmul.mubr.bf16.gmra.mrb[0].mxu0 %v792
    %v963 = vpop.f32.mrb[0].mxu0
    %v964 = vadd.f32 %v831, %v963
    %v965 = vpop.f32.mrb[0].mxu0
    %v966 = vpop.f32.mrb[0].mxu0
    %v967 = vpop.f32.mrb[0].mxu0
    %968 = vdwg.mxu0
    %vm969 = vcmask 15360
    %970 = vst.msk [vmem:[%s9] sm:$0xff] %vm969, %v964
    // Predicated region
    $region50: #{eyetracknet_mlp_forward.1} parent=1 // pred_check
      _
    $region51: #{eyetracknet_mlp_forward.1} parent=1 // pred_check_branch
      %972 = sbr.rel (0) target = $region53
    $region52: #{eyetracknet_mlp_forward.1} parent=1 // pred_region
      _
    $region53: #{eyetracknet_mlp_forward.1} parent=1 // pred_fallthru
      _
    // Predicated region
    $region54: #{eyetracknet_mlp_forward.1} parent=1 // pred_check
      _
    $region55: #{eyetracknet_mlp_forward.1} parent=1 // pred_check_branch
      %974 = sbr.rel (0) target = $region57
    $region56: #{eyetracknet_mlp_forward.1} parent=1 // pred_region
      _
    $region57: #{eyetracknet_mlp_forward.1} parent=1 // pred_fallthru
      _
    %975 = vsyncpa [#allocation3], 1
    %976 = vsyncpa [#allocation5], 1

</llo_original>
